<compile_context>
chip_gen: v7x
topology: tpu7x:2x2x1
jax: 0.10.0
libtpu: 0.0.40
codegen_flags: <defaults>
</compile_context>

<pallas_src>
import functools

import jax
import jax.numpy as jnp
from jax.experimental import pallas as pl
from jax.experimental.pallas import tpu as pltpu


def _baryrat_kernel(coeffs_ref, x_ref, xs_ref, out_ref, *, refine_inner):
    # coeffs_ref: SMEM (2, D) f32 -- row 0: w*phi (numerator), row 1: w (denominator)
    # x_ref     : VMEM (tb, tw) f32 input tile
    # xs_ref    : VMEM (D, tw) f32 shifted support points (x_support - 1), lane-aligned
    # out_ref   : VMEM (tb, tw) f32
    x = x_ref[...]
    D = xs_ref.shape[0]
    num = jnp.zeros_like(x)
    den = jnp.zeros_like(x)
    for d in range(D):                        # degree is small & static -> fully unrolled
        xs_row = xs_ref[pl.ds(d, 1), :]       # (1, tw) static slice of support row d
        t = x - xs_row                        # == x - x_support + 1 ("+1" folded on host)
        r = pl.reciprocal(t, approx=True)     # EUP slot (otherwise idle)
        if refine_inner:
            r = r * (2.0 - t * r)             # optional Newton step -> full f32 accuracy
        num = num + coeffs_ref[0, d] * r
        den = den + coeffs_ref[1, d] * r
    inv_den = pl.reciprocal(den, approx=True)
    inv_den = inv_den * (2.0 - den * inv_den)  # single Newton step on the final ratio
    out_ref[...] = num * inv_den


def _choose_tiles(B, W, max_tb, max_tw, min_steps):
    """Largest divisor-respecting (tb, tw) tile, preferring configurations that
    still leave >= min_steps grid steps (keeps both v7x TensorCores busy)."""
    tb_cands = [t for t in range(8, min(B, max_tb) + 1, 8) if B % t == 0]
    tw_cands = [t for t in range(128, min(W, max_tw) + 1, 128) if W % t == 0]
    best_key, best = None, None
    for tb in tb_cands:
        for tw in tw_cands:
            steps = (B // tb) * (W // tw)
            key = (steps >= min_steps, tb * tw, steps)
            if best_key is None or key > best_key:
                best_key, best = key, (tb, tw)
    return best


def rational_baryrat(x, x_support, coeffs_w_raw, coeffs_phi, epsilon=0.01,
                     *, refine_inner=False, max_tb=256, max_tw=1024, min_steps=8):
    B, W = x.shape
    D, S = x_support.shape
    assert W % S == 0, "input.shape[1] must be divisible by x_support.shape[1]"
    assert W % 128 == 0, "lane (last) dim must be a multiple of 128"

    # ---- parameter glue (matches get_coeffs_w / stack in the PyTorch module) ----
    coeffs_w = jnp.sign(coeffs_w_raw) * (epsilon + jnp.abs(coeffs_w_raw))
    coeffs = jnp.stack([coeffs_w * coeffs_phi, coeffs_w], axis=0).astype(jnp.float32)  # (2, D)

    # Fold the "+1" into the support points: kernel computes 1/(x - xs').
    xs_shift = (x_support - 1.0).astype(jnp.float32)

    # Pad the batch up to a multiple of 8 (sublane quantum); padded rows are
    # benign (t > 0 for them is irrelevant, they are sliced off at the end).
    x_f32 = x.astype(jnp.float32)
    B_pad = max(8, ((B + 7) // 8) * 8)
    if B_pad != B:
        x_f32 = jnp.concatenate(
            [x_f32, jnp.ones((B_pad - B, W), jnp.float32)], axis=0)

    tb, tw = _choose_tiles(B_pad, W, max_tb, max_tw, min_steps)

    if S % tw == 0:
        # Support stays (D, S) in HBM; the lane-block index wraps modulo S//tw.
        n_sup_blocks = S // tw
        xs_arr = xs_shift
        xs_spec = pl.BlockSpec((D, tw), lambda i, j: (0, j % n_sup_blocks))
    else:
        # A lane tile spans several support periods: replicate once on the host.
        xs_arr = jnp.tile(xs_shift, (1, W // S))
        xs_spec = pl.BlockSpec((D, tw), lambda i, j: (0, j))

    grid = (B_pad // tb, W // tw)
    out = pl.pallas_call(
        functools.partial(_baryrat_kernel, refine_inner=refine_inner),
        out_shape=jax.ShapeDtypeStruct((B_pad, W), jnp.float32),
        grid_spec=pltpu.PrefetchScalarGridSpec(
            num_scalar_prefetch=0,
            grid=grid,
            in_specs=[
                pl.BlockSpec(memory_space=pltpu.MemorySpace.SMEM),   # coeffs (2, D)
                pl.BlockSpec((tb, tw), lambda i, j: (i, j)),         # x tile
                xs_spec,                                             # support tile
            ],
            out_specs=pl.BlockSpec((tb, tw), lambda i, j: (i, j)),
        ),
        compiler_params=pltpu.CompilerParams(
            dimension_semantics=("parallel", "parallel"),
            vmem_limit_bytes=32 * 1024 * 1024,
        ),
    )(coeffs, x_f32, xs_arr)
    return out[:B] if B_pad != B else out


def _reference(x, x_support, coeffs_w_raw, coeffs_phi, epsilon):
    # Pure-JAX mirror of the PyTorch forward (exact divides).
    cw = jnp.sign(coeffs_w_raw) * (epsilon + jnp.abs(coeffs_w_raw))
    coeffs = jnp.stack([cw * coeffs_phi, cw], axis=0)
    xs_rep = jnp.tile(x_support, (1, x.shape[1] // x_support.shape[1]))
    X = 1.0 / (x[:, None, :] - xs_rep[None, :, :] + 1.0)
    PQ = jnp.einsum('ed,bdw->ebw', coeffs, X)
    return PQ[0] / PQ[1]


if __name__ == "__main__":
    key = jax.random.PRNGKey(0)
    epsilon = 0.01

    # (B, W, S, D):
    #   case 0 -> support replication path (tw > S), single-step grid
    #   case 1 -> resident/wrapping support path, multi-step grid on both axes
    #   case 2 -> batch-padding path (B not a multiple of 8)
    cases = [
        (8, 256, 128, 8),
        (16, 1024, 512, 6),
        (6, 256, 128, 5),
    ]

    for idx, (B, W, S, D) in enumerate(cases):
        k1, k2, k3, k4, key = jax.random.split(key, 5)
        # deterministic "reset_parameters": randn*0.1 and rand (weights made
        # positive so the barycentric denominator stays well conditioned).
        coeffs_w_raw = jnp.abs(jax.random.normal(k1, (D,), jnp.float32)) * 0.1
        coeffs_phi = jax.random.uniform(k2, (D,), jnp.float32)
        x_support = jax.random.uniform(k3, (D, S), jnp.float32)        # in [0, 1)
        x = jax.random.uniform(k4, (B, W), jnp.float32) + 0.5          # in [0.5, 1.5)

        ref = _reference(x, x_support, coeffs_w_raw, coeffs_phi, epsilon)

        # Fast (default) path: approx-only reciprocals in the degree loop.
        out = jax.block_until_ready(
            rational_baryrat(x, x_support, coeffs_w_raw, coeffs_phi, epsilon))
        assert out.shape == (B, W) and out.dtype == jnp.float32
        err_fast = float(jnp.max(jnp.abs(out - ref)))
        assert jnp.allclose(out, ref, rtol=2e-3, atol=2e-4), (idx, "fast", err_fast)

        # Refined path: per-degree Newton step -> tight tolerance.
        out_r = jax.block_until_ready(
            rational_baryrat(x, x_support, coeffs_w_raw, coeffs_phi, epsilon,
                             refine_inner=True))
        err_ref = float(jnp.max(jnp.abs(out_r - ref)))
        assert jnp.allclose(out_r, ref, rtol=1e-4, atol=1e-5), (idx, "refined", err_ref)

    print("KERNEL_OK")
</pallas_src>

<mosaic_0001>
module attributes {stable_mosaic.version = 11 : i64} {
  func.func @_baryrat_kernel(%arg0: i32, %arg1: i32, %arg2: memref<2x8xf32, #tpu.memory_space<smem>>, %arg3: memref<8x256xf32, #tpu.memory_space<vmem>>, %arg4: memref<8x256xf32, #tpu.memory_space<vmem>>, %arg5: memref<8x256xf32, #tpu.memory_space<vmem>>) attributes {dimension_semantics = [#tpu.dimension_semantics<parallel>, #tpu.dimension_semantics<parallel>], iteration_bounds = array<i64: 1, 1>, scalar_prefetch = 0 : i64, scratch_operands = 0 : i64, tpu.core_type = #tpu.core_type<tc>, window_params = [{transform_indices = @transform_0, window_bounds = array<i64: 2, 8>}, {transform_indices = @transform_1, window_bounds = array<i64: 8, 256>}, {transform_indices = @transform_2, window_bounds = array<i64: 8, 256>}, {transform_indices = @transform_3, window_bounds = array<i64: 8, 256>}]} {
    %c0 = arith.constant 0 : index
    %c0_0 = arith.constant 0 : index
    %0 = vector.load %arg3[%c0, %c0_0] : memref<8x256xf32, #tpu.memory_space<vmem>>, vector<8x256xf32>
    %cst = arith.constant 0.000000e+00 : f32
    %1 = vector.broadcast %cst : f32 to vector<8x256xf32>
    %cst_1 = arith.constant 0.000000e+00 : f32
    %2 = vector.broadcast %cst_1 : f32 to vector<8x256xf32>
    %c0_2 = arith.constant 0 : index
    %c0_3 = arith.constant 0 : index
    %3 = vector.load %arg4[%c0_2, %c0_3] : memref<8x256xf32, #tpu.memory_space<vmem>>, vector<1x256xf32>
    %4 = vector.broadcast %3 : vector<1x256xf32> to vector<8x256xf32>
    %5 = arith.subf %0, %4 : vector<8x256xf32>
    %6 = tpu.reciprocal %5 {approx = true} : vector<8x256xf32> -> vector<8x256xf32>
    %c0_4 = arith.constant 0 : index
    %c0_5 = arith.constant 0 : index
    %7 = memref.load %arg2[%c0_4, %c0_5] : memref<2x8xf32, #tpu.memory_space<smem>>
    %8 = vector.broadcast %7 : f32 to vector<8x256xf32>
    %9 = arith.mulf %8, %6 : vector<8x256xf32>
    %10 = arith.addf %1, %9 : vector<8x256xf32>
    %c1 = arith.constant 1 : index
    %c0_6 = arith.constant 0 : index
    %11 = memref.load %arg2[%c1, %c0_6] : memref<2x8xf32, #tpu.memory_space<smem>>
    %12 = vector.broadcast %11 : f32 to vector<8x256xf32>
    %13 = arith.mulf %12, %6 : vector<8x256xf32>
    %14 = arith.addf %2, %13 : vector<8x256xf32>
    %c1_7 = arith.constant 1 : index
    %c0_8 = arith.constant 0 : index
    %15 = vector.load %arg4[%c1_7, %c0_8] : memref<8x256xf32, #tpu.memory_space<vmem>>, vector<1x256xf32>
    %16 = vector.broadcast %15 : vector<1x256xf32> to vector<8x256xf32>
    %17 = arith.subf %0, %16 : vector<8x256xf32>
    %18 = tpu.reciprocal %17 {approx = true} : vector<8x256xf32> -> vector<8x256xf32>
    %c0_9 = arith.constant 0 : index
    %c1_10 = arith.constant 1 : index
    %19 = memref.load %arg2[%c0_9, %c1_10] : memref<2x8xf32, #tpu.memory_space<smem>>
    %20 = vector.broadcast %19 : f32 to vector<8x256xf32>
    %21 = arith.mulf %20, %18 : vector<8x256xf32>
    %22 = arith.addf %10, %21 : vector<8x256xf32>
    %c1_11 = arith.constant 1 : index
    %c1_12 = arith.constant 1 : index
    %23 = memref.load %arg2[%c1_11, %c1_12] : memref<2x8xf32, #tpu.memory_space<smem>>
    %24 = vector.broadcast %23 : f32 to vector<8x256xf32>
    %25 = arith.mulf %24, %18 : vector<8x256xf32>
    %26 = arith.addf %14, %25 : vector<8x256xf32>
    %c2 = arith.constant 2 : index
    %c0_13 = arith.constant 0 : index
    %27 = vector.load %arg4[%c2, %c0_13] : memref<8x256xf32, #tpu.memory_space<vmem>>, vector<1x256xf32>
    %28 = vector.broadcast %27 : vector<1x256xf32> to vector<8x256xf32>
    %29 = arith.subf %0, %28 : vector<8x256xf32>
    %30 = tpu.reciprocal %29 {approx = true} : vector<8x256xf32> -> vector<8x256xf32>
    %c0_14 = arith.constant 0 : index
    %c2_15 = arith.constant 2 : index
    %31 = memref.load %arg2[%c0_14, %c2_15] : memref<2x8xf32, #tpu.memory_space<smem>>
    %32 = vector.broadcast %31 : f32 to vector<8x256xf32>
    %33 = arith.mulf %32, %30 : vector<8x256xf32>
    %34 = arith.addf %22, %33 : vector<8x256xf32>
    %c1_16 = arith.constant 1 : index
    %c2_17 = arith.constant 2 : index
    %35 = memref.load %arg2[%c1_16, %c2_17] : memref<2x8xf32, #tpu.memory_space<smem>>
    %36 = vector.broadcast %35 : f32 to vector<8x256xf32>
    %37 = arith.mulf %36, %30 : vector<8x256xf32>
    %38 = arith.addf %26, %37 : vector<8x256xf32>
    %c3 = arith.constant 3 : index
    %c0_18 = arith.constant 0 : index
    %39 = vector.load %arg4[%c3, %c0_18] : memref<8x256xf32, #tpu.memory_space<vmem>>, vector<1x256xf32>
    %40 = vector.broadcast %39 : vector<1x256xf32> to vector<8x256xf32>
    %41 = arith.subf %0, %40 : vector<8x256xf32>
    %42 = tpu.reciprocal %41 {approx = true} : vector<8x256xf32> -> vector<8x256xf32>
    %c0_19 = arith.constant 0 : index
    %c3_20 = arith.constant 3 : index
    %43 = memref.load %arg2[%c0_19, %c3_20] : memref<2x8xf32, #tpu.memory_space<smem>>
    %44 = vector.broadcast %43 : f32 to vector<8x256xf32>
    %45 = arith.mulf %44, %42 : vector<8x256xf32>
    %46 = arith.addf %34, %45 : vector<8x256xf32>
    %c1_21 = arith.constant 1 : index
    %c3_22 = arith.constant 3 : index
    %47 = memref.load %arg2[%c1_21, %c3_22] : memref<2x8xf32, #tpu.memory_space<smem>>
    %48 = vector.broadcast %47 : f32 to vector<8x256xf32>
    %49 = arith.mulf %48, %42 : vector<8x256xf32>
    %50 = arith.addf %38, %49 : vector<8x256xf32>
    %c4 = arith.constant 4 : index
    %c0_23 = arith.constant 0 : index
    %51 = vector.load %arg4[%c4, %c0_23] : memref<8x256xf32, #tpu.memory_space<vmem>>, vector<1x256xf32>
    %52 = vector.broadcast %51 : vector<1x256xf32> to vector<8x256xf32>
    %53 = arith.subf %0, %52 : vector<8x256xf32>
    %54 = tpu.reciprocal %53 {approx = true} : vector<8x256xf32> -> vector<8x256xf32>
    %c0_24 = arith.constant 0 : index
    %c4_25 = arith.constant 4 : index
    %55 = memref.load %arg2[%c0_24, %c4_25] : memref<2x8xf32, #tpu.memory_space<smem>>
    %56 = vector.broadcast %55 : f32 to vector<8x256xf32>
    %57 = arith.mulf %56, %54 : vector<8x256xf32>
    %58 = arith.addf %46, %57 : vector<8x256xf32>
    %c1_26 = arith.constant 1 : index
    %c4_27 = arith.constant 4 : index
    %59 = memref.load %arg2[%c1_26, %c4_27] : memref<2x8xf32, #tpu.memory_space<smem>>
    %60 = vector.broadcast %59 : f32 to vector<8x256xf32>
    %61 = arith.mulf %60, %54 : vector<8x256xf32>
    %62 = arith.addf %50, %61 : vector<8x256xf32>
    %c5 = arith.constant 5 : index
    %c0_28 = arith.constant 0 : index
    %63 = vector.load %arg4[%c5, %c0_28] : memref<8x256xf32, #tpu.memory_space<vmem>>, vector<1x256xf32>
    %64 = vector.broadcast %63 : vector<1x256xf32> to vector<8x256xf32>
    %65 = arith.subf %0, %64 : vector<8x256xf32>
    %66 = tpu.reciprocal %65 {approx = true} : vector<8x256xf32> -> vector<8x256xf32>
    %c0_29 = arith.constant 0 : index
    %c5_30 = arith.constant 5 : index
    %67 = memref.load %arg2[%c0_29, %c5_30] : memref<2x8xf32, #tpu.memory_space<smem>>
    %68 = vector.broadcast %67 : f32 to vector<8x256xf32>
    %69 = arith.mulf %68, %66 : vector<8x256xf32>
    %70 = arith.addf %58, %69 : vector<8x256xf32>
    %c1_31 = arith.constant 1 : index
    %c5_32 = arith.constant 5 : index
    %71 = memref.load %arg2[%c1_31, %c5_32] : memref<2x8xf32, #tpu.memory_space<smem>>
    %72 = vector.broadcast %71 : f32 to vector<8x256xf32>
    %73 = arith.mulf %72, %66 : vector<8x256xf32>
    %74 = arith.addf %62, %73 : vector<8x256xf32>
    %c6 = arith.constant 6 : index
    %c0_33 = arith.constant 0 : index
    %75 = vector.load %arg4[%c6, %c0_33] : memref<8x256xf32, #tpu.memory_space<vmem>>, vector<1x256xf32>
    %76 = vector.broadcast %75 : vector<1x256xf32> to vector<8x256xf32>
    %77 = arith.subf %0, %76 : vector<8x256xf32>
    %78 = tpu.reciprocal %77 {approx = true} : vector<8x256xf32> -> vector<8x256xf32>
    %c0_34 = arith.constant 0 : index
    %c6_35 = arith.constant 6 : index
    %79 = memref.load %arg2[%c0_34, %c6_35] : memref<2x8xf32, #tpu.memory_space<smem>>
    %80 = vector.broadcast %79 : f32 to vector<8x256xf32>
    %81 = arith.mulf %80, %78 : vector<8x256xf32>
    %82 = arith.addf %70, %81 : vector<8x256xf32>
    %c1_36 = arith.constant 1 : index
    %c6_37 = arith.constant 6 : index
    %83 = memref.load %arg2[%c1_36, %c6_37] : memref<2x8xf32, #tpu.memory_space<smem>>
    %84 = vector.broadcast %83 : f32 to vector<8x256xf32>
    %85 = arith.mulf %84, %78 : vector<8x256xf32>
    %86 = arith.addf %74, %85 : vector<8x256xf32>
    %c7 = arith.constant 7 : index
    %c0_38 = arith.constant 0 : index
    %87 = vector.load %arg4[%c7, %c0_38] : memref<8x256xf32, #tpu.memory_space<vmem>>, vector<1x256xf32>
    %88 = vector.broadcast %87 : vector<1x256xf32> to vector<8x256xf32>
    %89 = arith.subf %0, %88 : vector<8x256xf32>
    %90 = tpu.reciprocal %89 {approx = true} : vector<8x256xf32> -> vector<8x256xf32>
    %c0_39 = arith.constant 0 : index
    %c7_40 = arith.constant 7 : index
    %91 = memref.load %arg2[%c0_39, %c7_40] : memref<2x8xf32, #tpu.memory_space<smem>>
    %92 = vector.broadcast %91 : f32 to vector<8x256xf32>
    %93 = arith.mulf %92, %90 : vector<8x256xf32>
    %94 = arith.addf %82, %93 : vector<8x256xf32>
    %c1_41 = arith.constant 1 : index
    %c7_42 = arith.constant 7 : index
    %95 = memref.load %arg2[%c1_41, %c7_42] : memref<2x8xf32, #tpu.memory_space<smem>>
    %96 = vector.broadcast %95 : f32 to vector<8x256xf32>
    %97 = arith.mulf %96, %90 : vector<8x256xf32>
    %98 = arith.addf %86, %97 : vector<8x256xf32>
    %99 = tpu.reciprocal %98 {approx = true} : vector<8x256xf32> -> vector<8x256xf32>
    %100 = arith.mulf %98, %99 : vector<8x256xf32>
    %cst_43 = arith.constant 2.000000e+00 : f32
    %101 = vector.broadcast %cst_43 : f32 to vector<8x256xf32>
    %102 = arith.subf %101, %100 : vector<8x256xf32>
    %103 = arith.mulf %99, %102 : vector<8x256xf32>
    %104 = arith.mulf %94, %103 : vector<8x256xf32>
    %c0_44 = arith.constant 0 : index
    %c0_45 = arith.constant 0 : index
    %105 = vector.load %arg5[%c0_44, %c0_45] : memref<8x256xf32, #tpu.memory_space<vmem>>, vector<8x256xf32>
    tpu.vector_store %arg5[%c0_44, %c0_45], %104 {strides = array<i32>} : memref<8x256xf32, #tpu.memory_space<vmem>>, vector<8x256xf32>,
    return
  }
  func.func @transform_0(%arg0: i32, %arg1: i32) -> (i32, i32) {
    %c0_i32 = arith.constant 0 : i32
    %c0_i32_0 = arith.constant 0 : i32
    %c0_i32_1 = arith.constant 0 : i32
    return %c0_i32, %c0_i32_0 : i32, i32
  }
  func.func @transform_1(%arg0: i32, %arg1: i32) -> (i32, i32) {
    %c0_i32 = arith.constant 0 : i32
    return %arg0, %arg1 : i32, i32
  }
  func.func @transform_2(%arg0: i32, %arg1: i32) -> (i32, i32) {
    %c0_i32 = arith.constant 0 : i32
    %c0_i32_0 = arith.constant 0 : i32
    return %c0_i32, %arg1 : i32, i32
  }
  func.func @transform_3(%arg0: i32, %arg1: i32) -> (i32, i32) {
    %c0_i32 = arith.constant 0 : i32
    return %arg0, %arg1 : i32, i32
  }
}

</mosaic_0001>

<llo_original>
// kernel: tpu_custom_call.1
$region0: #{tpu_custom_call.1}
  #allocation0 [shape = 'u32[]', space=smem, size = 0x4, offset = 0x4, fixed_abs, tag = 'smem constant byte address 0x4 - core index']
  #allocation1 [shape = 'u32[144,128]{1,0:T(1,128)}', space=vmem, size = 0x12000, scoped, tag = 'internal scratch']
  %s0 = inlined_call_operand.hbm [shape: f32[2,8], index: 0, kind: input, shape index: {}]
  %s1 = inlined_call_operand.hbm [shape: f32[8,256], index: 1, kind: input, shape index: {}]
  %s2 = inlined_call_operand.hbm [shape: f32[8,256], index: 2, kind: input, shape index: {}]
  %s3 = inlined_call_operand.hbm [shape: f32[8,256], index: 3, kind: output, shape index: {}]
  %s4 = sld [smem:[#allocation0]]
  $region34: #{tpu_custom_call.1} parent=0
    _
  %s6 = ssub.s32 1, %s4
  %s7 = scalar_select 0, %s6, %s4
  $region1: #{tpu_custom_call.1} parent=0
    #allocation2 [shape = 'u8[1024]{0}', space=smem, size = 0x400, scoped, tag = 'input window, operand 0, single buffered']
    #allocation3 [shape = 's32[1]{0}', space=sflag, size = 0x4, scoped, tag = 'scoped memory for tpu_custom_call.1']
    #allocation4 [shape = 's32[1]{0}', space=sflag, size = 0x4, scoped, tag = 'scoped memory for tpu_custom_call.1']
    #allocation5 [shape = 's32[1]{0}', space=sflag, size = 0x4, scoped, tag = 'scoped memory for tpu_custom_call.1']
    #allocation6 [shape = 'u8[8192]{0}', space=vmem, size = 0x2000, scoped, tag = 'input window, operand 1, single buffered']
    #allocation7 [shape = 'u8[8192]{0}', space=vmem, size = 0x2000, scoped, tag = 'input window, operand 2, single buffered']
    #allocation8 [shape = 's32[1]{0}', space=sflag, size = 0x4, scoped, tag = 'scoped memory for tpu_custom_call.1']
    #allocation9 [shape = 'u8[8192]{0}', space=vmem, size = 0x2000, scoped, tag = 'output window, operand 0, single buffered']
    %8 = vsyncpa [#allocation5], 0
    %9 = vsyncpa [#allocation3], 0
    %10 = vsyncpa [#allocation8], 0
    %11 = vsyncpa [#allocation4], 0
    // Predicated region
    $region2: #{tpu_custom_call.1} parent=1 // pred_check
      _
    $region3: #{tpu_custom_call.1} parent=1 // pred_check_branch
      %13 = sbr.rel (0) target = $region5
    $region4: #{tpu_custom_call.1} parent=1 // pred_region
      %s15 = ssub.s32 32, 32
      %16 = vsyncadd [#allocation5], %s15
      %19 = dma.hbm_to_smem %s0, 32, [#allocation2], [#allocation5]
    $region5: #{tpu_custom_call.1} parent=1 // pred_fallthru
      _
    // Predicated region
    $region6: #{tpu_custom_call.1} parent=1 // pred_check
      _
    $region7: #{tpu_custom_call.1} parent=1 // pred_check_branch
      %21 = sbr.rel (0) target = $region9
    $region8: #{tpu_custom_call.1} parent=1 // pred_region
      %s23 = ssub.s32 256, 256
      %24 = vsyncadd [#allocation3], %s23
      %s26 = sshll.u32 [#allocation6], 4
      %s27 = int_to_ptr.vmem [resolvable:$true] %s26
      %29 = dma.hbm_to_vmem [thread:$0]  %s1, 256, %s27, [#allocation3]
    $region9: #{tpu_custom_call.1} parent=1 // pred_fallthru
      _
    // Predicated region
    $region10: #{tpu_custom_call.1} parent=1 // pred_check
      _
    $region11: #{tpu_custom_call.1} parent=1 // pred_check_branch
      %31 = sbr.rel (0) target = $region13
    $region12: #{tpu_custom_call.1} parent=1 // pred_region
      %s33 = ssub.s32 256, 256
      %34 = vsyncadd [#allocation8], %s33
      %s36 = sshll.u32 [#allocation7], 4
      %s37 = int_to_ptr.vmem [resolvable:$true] %s36
      %39 = dma.hbm_to_vmem [thread:$0]  %s2, 256, %s37, [#allocation8]
    $region13: #{tpu_custom_call.1} parent=1 // pred_fallthru
      _
    // Predicated region
    $region14: #{tpu_custom_call.1} parent=1 // pred_check
      _
    $region15: #{tpu_custom_call.1} parent=1 // pred_check_branch
      %41 = sbr.rel (0) target = $region17
    $region16: #{tpu_custom_call.1} parent=1 // pred_region
      %42 = dma.done [#allocation5], 32
    $region17: #{tpu_custom_call.1} parent=1 // pred_fallthru
      _
    // Predicated region
    $region18: #{tpu_custom_call.1} parent=1 // pred_check
      _
    $region19: #{tpu_custom_call.1} parent=1 // pred_check_branch
      %44 = sbr.rel (0) target = $region21
    $region20: #{tpu_custom_call.1} parent=1 // pred_region
      %45 = dma.done [#allocation3], 256
    $region21: #{tpu_custom_call.1} parent=1 // pred_fallthru
      _
    // Predicated region
    $region22: #{tpu_custom_call.1} parent=1 // pred_check
      _
    $region23: #{tpu_custom_call.1} parent=1 // pred_check_branch
      %47 = sbr.rel (0) target = $region25
    $region24: #{tpu_custom_call.1} parent=1 // pred_region
      %48 = dma.done [#allocation8], 256
    $region25: #{tpu_custom_call.1} parent=1 // pred_fallthru
      _
    %49 = sfence
    %v50 = vld [vmem:[#allocation6] sm:$0xff]
    %v51 = vld [vmem:[#allocation6 + $0x8] sm:$0xff]
    %v52 = vld [vmem:[#allocation7] ss:$8 sm:$0x3]
    %v54 = vlaneseq
    %v55 = vshrl.u32 %v54, 7
    %v56 = vsub.s32 0, %v55
    %v57 = vrot.slane %v52, %v56
    %v58 = vlaneseq
    %v59 = vshrl.u32 %v58, 7
    %v60 = vsub.s32 1, %v59
    %v61 = vrot.slane %v52, %v60
    %v64 = vsub.f32 %v50, %v57
    %v65 = vsub.f32 %v51, %v61
    %v66 = vrcp.pop %v64
    %v67 = vrcp.pop %v65
    %s68 = sld [smem:[#allocation2]]
    %v69 = vstv %s68
    %v70 = vmul.f32 %v69, %v66
    %v71 = vmul.f32 %v69, %v67
    %v72 = vadd.f32 %v70, 0.0
    %v73 = vadd.f32 %v71, 0.0
    %s74 = sld [smem:[#allocation2 + $0x80]]
    %v75 = vstv %s74
    %v76 = vmul.f32 %v75, %v66
    %v77 = vmul.f32 %v75, %v67
    %v78 = vadd.f32 %v76, 0.0
    %v79 = vadd.f32 %v77, 0.0
    %s80 = scalar_lea.vmem [#allocation7], 1
    %v81 = vld [vmem:[%s80] ss:$8 sm:$0x3]
    %v83 = vlaneseq
    %v84 = vshrl.u32 %v83, 7
    %v85 = vsub.s32 0, %v84
    %v86 = vrot.slane %v81, %v85
    %v87 = vlaneseq
    %v88 = vshrl.u32 %v87, 7
    %v89 = vsub.s32 1, %v88
    %v90 = vrot.slane %v81, %v89
    %v93 = vsub.f32 %v50, %v86
    %v94 = vsub.f32 %v51, %v90
    %v95 = vrcp.pop %v93
    %v96 = vrcp.pop %v94
    %s97 = sld [smem:[#allocation2 + $0x1]]
    %v98 = vstv %s97
    %v99 = vmul.f32 %v98, %v95
    %v100 = vmul.f32 %v98, %v96
    %v101 = vadd.f32 %v72, %v99
    %v102 = vadd.f32 %v73, %v100
    %s103 = sld [smem:[#allocation2 + $0x81]]
    %v104 = vstv %s103
    %v105 = vmul.f32 %v104, %v95
    %v106 = vmul.f32 %v104, %v96
    %v107 = vadd.f32 %v78, %v105
    %v108 = vadd.f32 %v79, %v106
    %s109 = scalar_lea.vmem [#allocation7], 2
    %v110 = vld [vmem:[%s109] ss:$8 sm:$0x3]
    %v112 = vlaneseq
    %v113 = vshrl.u32 %v112, 7
    %v114 = vsub.s32 0, %v113
    %v115 = vrot.slane %v110, %v114
    %v116 = vlaneseq
    %v117 = vshrl.u32 %v116, 7
    %v118 = vsub.s32 1, %v117
    %v119 = vrot.slane %v110, %v118
    %v122 = vsub.f32 %v50, %v115
    %v123 = vsub.f32 %v51, %v119
    %v124 = vrcp.pop %v122
    %v125 = vrcp.pop %v123
    %s126 = sld [smem:[#allocation2 + $0x2]]
    %v127 = vstv %s126
    %v128 = vmul.f32 %v127, %v124
    %v129 = vmul.f32 %v127, %v125
    %v130 = vadd.f32 %v101, %v128
    %v131 = vadd.f32 %v102, %v129
    %s132 = sld [smem:[#allocation2 + $0x82]]
    %v133 = vstv %s132
    %v134 = vmul.f32 %v133, %v124
    %v135 = vmul.f32 %v133, %v125
    %v136 = vadd.f32 %v107, %v134
    %v137 = vadd.f32 %v108, %v135
    %s138 = scalar_lea.vmem [#allocation7], 3
    %v139 = vld [vmem:[%s138] ss:$8 sm:$0x3]
    %v141 = vlaneseq
    %v142 = vshrl.u32 %v141, 7
    %v143 = vsub.s32 0, %v142
    %v144 = vrot.slane %v139, %v143
    %v145 = vlaneseq
    %v146 = vshrl.u32 %v145, 7
    %v147 = vsub.s32 1, %v146
    %v148 = vrot.slane %v139, %v147
    %v151 = vsub.f32 %v50, %v144
    %v152 = vsub.f32 %v51, %v148
    %v153 = vrcp.pop %v151
    %v154 = vrcp.pop %v152
    %s155 = sld [smem:[#allocation2 + $0x3]]
    %v156 = vstv %s155
    %v157 = vmul.f32 %v156, %v153
    %v158 = vmul.f32 %v156, %v154
    %v159 = vadd.f32 %v130, %v157
    %v160 = vadd.f32 %v131, %v158
    %s161 = sld [smem:[#allocation2 + $0x83]]
    %v162 = vstv %s161
    %v163 = vmul.f32 %v162, %v153
    %v164 = vmul.f32 %v162, %v154
    %v165 = vadd.f32 %v136, %v163
    %v166 = vadd.f32 %v137, %v164
    %s167 = scalar_lea.vmem [#allocation7], 4
    %v168 = vld [vmem:[%s167] ss:$8 sm:$0x3]
    %v170 = vlaneseq
    %v171 = vshrl.u32 %v170, 7
    %v172 = vsub.s32 0, %v171
    %v173 = vrot.slane %v168, %v172
    %v174 = vlaneseq
    %v175 = vshrl.u32 %v174, 7
    %v176 = vsub.s32 1, %v175
    %v177 = vrot.slane %v168, %v176
    %v180 = vsub.f32 %v50, %v173
    %v181 = vsub.f32 %v51, %v177
    %v182 = vrcp.pop %v180
    %v183 = vrcp.pop %v181
    %s184 = sld [smem:[#allocation2 + $0x4]]
    %v185 = vstv %s184
    %v186 = vmul.f32 %v185, %v182
    %v187 = vmul.f32 %v185, %v183
    %v188 = vadd.f32 %v159, %v186
    %v189 = vadd.f32 %v160, %v187
    %s190 = sld [smem:[#allocation2 + $0x84]]
    %v191 = vstv %s190
    %v192 = vmul.f32 %v191, %v182
    %v193 = vmul.f32 %v191, %v183
    %v194 = vadd.f32 %v165, %v192
    %v195 = vadd.f32 %v166, %v193
    %s196 = scalar_lea.vmem [#allocation7], 5
    %v197 = vld [vmem:[%s196] ss:$8 sm:$0x3]
    %v199 = vlaneseq
    %v200 = vshrl.u32 %v199, 7
    %v201 = vsub.s32 0, %v200
    %v202 = vrot.slane %v197, %v201
    %v203 = vlaneseq
    %v204 = vshrl.u32 %v203, 7
    %v205 = vsub.s32 1, %v204
    %v206 = vrot.slane %v197, %v205
    %v209 = vsub.f32 %v50, %v202
    %v210 = vsub.f32 %v51, %v206
    %v211 = vrcp.pop %v209
    %v212 = vrcp.pop %v210
    %s213 = sld [smem:[#allocation2 + $0x5]]
    %v214 = vstv %s213
    %v215 = vmul.f32 %v214, %v211
    %v216 = vmul.f32 %v214, %v212
    %v217 = vadd.f32 %v188, %v215
    %v218 = vadd.f32 %v189, %v216
    %s219 = sld [smem:[#allocation2 + $0x85]]
    %v220 = vstv %s219
    %v221 = vmul.f32 %v220, %v211
    %v222 = vmul.f32 %v220, %v212
    %v223 = vadd.f32 %v194, %v221
    %v224 = vadd.f32 %v195, %v222
    %s225 = scalar_lea.vmem [#allocation7], 6
    %v226 = vld [vmem:[%s225] ss:$8 sm:$0x3]
    %v228 = vlaneseq
    %v229 = vshrl.u32 %v228, 7
    %v230 = vsub.s32 0, %v229
    %v231 = vrot.slane %v226, %v230
    %v232 = vlaneseq
    %v233 = vshrl.u32 %v232, 7
    %v234 = vsub.s32 1, %v233
    %v235 = vrot.slane %v226, %v234
    %v238 = vsub.f32 %v50, %v231
    %v239 = vsub.f32 %v51, %v235
    %v240 = vrcp.pop %v238
    %v241 = vrcp.pop %v239
    %s242 = sld [smem:[#allocation2 + $0x6]]
    %v243 = vstv %s242
    %v244 = vmul.f32 %v243, %v240
    %v245 = vmul.f32 %v243, %v241
    %v246 = vadd.f32 %v217, %v244
    %v247 = vadd.f32 %v218, %v245
    %s248 = sld [smem:[#allocation2 + $0x86]]
    %v249 = vstv %s248
    %v250 = vmul.f32 %v249, %v240
    %v251 = vmul.f32 %v249, %v241
    %v252 = vadd.f32 %v223, %v250
    %v253 = vadd.f32 %v224, %v251
    %s254 = scalar_lea.vmem [#allocation7], 7
    %v255 = vld [vmem:[%s254] ss:$8 sm:$0x3]
    %v257 = vlaneseq
    %v258 = vshrl.u32 %v257, 7
    %v259 = vsub.s32 0, %v258
    %v260 = vrot.slane %v255, %v259
    %v261 = vlaneseq
    %v262 = vshrl.u32 %v261, 7
    %v263 = vsub.s32 1, %v262
    %v264 = vrot.slane %v255, %v263
    %v267 = vsub.f32 %v50, %v260
    %v268 = vsub.f32 %v51, %v264
    %v269 = vrcp.pop %v267
    %v270 = vrcp.pop %v268
    %s271 = sld [smem:[#allocation2 + $0x7]]
    %v272 = vstv %s271
    %v273 = vmul.f32 %v272, %v269
    %v274 = vmul.f32 %v272, %v270
    %v275 = vadd.f32 %v246, %v273
    %v276 = vadd.f32 %v247, %v274
    %s277 = sld [smem:[#allocation2 + $0x87]]
    %v278 = vstv %s277
    %v279 = vmul.f32 %v278, %v269
    %v280 = vmul.f32 %v278, %v270
    %v281 = vadd.f32 %v252, %v279
    %v282 = vadd.f32 %v253, %v280
    %v283 = vrcp.pop %v281
    %v284 = vrcp.pop %v282
    %v285 = vmul.f32 %v281, %v283
    %v286 = vmul.f32 %v282, %v284
    %v287 = vsub.f32 2.0, %v285
    %v288 = vsub.f32 2.0, %v286
    %v289 = vmul.f32 %v283, %v287
    %v290 = vmul.f32 %v284, %v288
    %v291 = vmul.f32 %v275, %v289
    %v292 = vmul.f32 %v276, %v290
    %293 = vst [vmem:[#allocation9] sm:$0xff] %v291
    %294 = vst [vmem:[#allocation9 + $0x8] sm:$0xff] %v292
    // Predicated region
    $region26: #{tpu_custom_call.1} parent=1 // pred_check
      _
    $region27: #{tpu_custom_call.1} parent=1 // pred_check_branch
      %296 = sbr.rel (0) target = $region29
    $region28: #{tpu_custom_call.1} parent=1 // pred_region
      %s298 = ssub.s32 256, 256
      %299 = vsyncadd [#allocation4], %s298
      %s301 = sshll.u32 [#allocation9], 4
      %s302 = int_to_ptr.vmem [resolvable:$true] %s301
      %304 = dma.vmem_to_hbm [thread:$0]  %s302, 256, %s3, [#allocation4]
    $region29: #{tpu_custom_call.1} parent=1 // pred_fallthru
      _
    // Predicated region
    $region30: #{tpu_custom_call.1} parent=1 // pred_check
      _
    $region31: #{tpu_custom_call.1} parent=1 // pred_check_branch
      %306 = sbr.rel (0) target = $region33
    $region32: #{tpu_custom_call.1} parent=1 // pred_region
      %307 = dma.done [#allocation4], 256
    $region33: #{tpu_custom_call.1} parent=1 // pred_fallthru
      _
    %308 = vsyncpa [#allocation3], 1
    %309 = vsyncpa [#allocation8], 1
    %310 = vsyncpa [#allocation4], 1
    %311 = vsyncpa [#allocation5], 1

</llo_original>
